<compile_context>
chip_gen: v7x
topology: tpu7x:2x2x1
jax: 0.10.0
libtpu: 0.0.40
codegen_flags: <defaults>
</compile_context>

<pallas_src>
import jax
import jax.numpy as jnp
from jax.experimental import pallas as pl
from jax.experimental.pallas import tpu as pltpu


# ----------------------------------------------------------------------------- kernels
def _packed_kernel(x_ref, w_ref, b_ref, j_ref, probs_ref):
    # addmm on the MXU; r original rows are packed per MXU row.
    x = x_ref[...].astype(jnp.float32)                 # cast in-kernel (native dtype stream)
    logits = jnp.dot(x, w_ref[...], preferred_element_type=jnp.float32) + b_ref[...]

    # Numerically stable sigmoid: only exponentiate non-positive values.
    z = jnp.exp(-jnp.abs(logits))                      # EUP
    inv = pl.reciprocal(1.0 + z, approx=True)          # EUP (free slot)
    p = jnp.where(logits >= 0, inv, z * inv)

    # Per-original-row normalization without any cross-lane relayout:
    # j_ref is block-diagonal with all-ones CxC blocks, so (p @ J) broadcasts
    # each original row's sum across its own C-lane block.
    denom = jnp.dot(p, j_ref[...], preferred_element_type=jnp.float32)
    denom = jnp.maximum(denom, jnp.float32(1e-30))     # guard all-underflow rows (no NaN)
    probs_ref[...] = (p * pl.reciprocal(denom, approx=True)).astype(probs_ref.dtype)


def _unpacked_kernel(x_ref, w_ref, b_ref, probs_ref):
    # Fallback when C does not divide 128: plain row-sum normalization.
    x = x_ref[...].astype(jnp.float32)
    logits = jnp.dot(x, w_ref[...], preferred_element_type=jnp.float32) + b_ref[...]
    z = jnp.exp(-jnp.abs(logits))
    inv = pl.reciprocal(1.0 + z, approx=True)
    p = jnp.where(logits >= 0, inv, z * inv)
    denom = jnp.maximum(jnp.sum(p, axis=1, keepdims=True), jnp.float32(1e-30))
    probs_ref[...] = (p * pl.reciprocal(denom, approx=True)).astype(probs_ref.dtype)


# ----------------------------------------------------------------------------- sizing helpers
def _vmem_capacity_bytes():
    """Per-TensorCore VMEM capacity; default to the most constrained gen (v7x: 64 MiB)."""
    try:
        cap = int(getattr(pltpu.get_tpu_info(), "vmem_capacity_bytes", 0))
        if cap > 0:
            return cap
    except Exception:
        pass
    return 64 * 1024 * 1024


def _choose_packing(n_features, n_classes):
    """Rows packed per MXU row so the probs store is lane-dense (r*C = 128)."""
    if n_classes >= 128 or 128 % n_classes != 0:
        return 1
    r = 128 // n_classes
    # Keep the block-diagonal weight (r*F x r*C f32, VMEM-resident) modest.
    while r > 1 and 4 * (r * n_features) * (r * n_classes) > 8 * 1024 * 1024:
        r //= 2
    return max(r, 1)


def _choose_tile_rows(np_rows, in_row_bytes, out_row_bytes, fixed_bytes, vmem_limit, sub):
    """Packed-row tile: byte-sized (multi-MiB x slabs to hit the HBM roofline),
    a multiple of `sub` sublanes, within the double-buffered VMEM budget, and
    giving >= 2 grid steps when possible (keeps both v7x TensorCores busy)."""
    per_row = 2 * (in_row_bytes + out_row_bytes)               # double-buffered stream
    budget = max(vmem_limit - fixed_bytes - 4 * 1024 * 1024, per_row * sub)
    rows_budget = max(sub, (budget // per_row) // sub * sub)
    target_x_bytes = 8 * 1024 * 1024                           # ~8 MiB x per tile
    rows_target = max(sub, (target_x_bytes // max(in_row_bytes, 1)) // sub * sub)
    tile = min(rows_budget, rows_target, np_rows)
    if tile >= np_rows:
        if np_rows >= 2 * sub:
            tile = max(sub, (np_rows // 2) // sub * sub)       # force >= 2 steps
        else:
            tile = np_rows                                     # single full-extent block
    return int(tile)


# ----------------------------------------------------------------------------- forward
def linear_model_forward(x, coefficients, intercepts):
    """Pallas LinearModel.forward (classification, loss='log', non-binary,
    classes == [0..C-1]).  Returns (predictions int32 (N,), probabilities f32 (N, C))."""
    if jnp.dtype(x.dtype).itemsize > 4:
        x = x.astype(jnp.float32)                      # module casts to float anyway
    N, F = x.shape
    C = coefficients.shape[1]
    w = coefficients.astype(jnp.float32)
    b = intercepts.reshape(1, C).astype(jnp.float32)

    r = _choose_packing(F, C)
    itemsize = jnp.dtype(x.dtype).itemsize
    sub = {4: 8, 2: 16, 1: 32}.get(itemsize, 8)        # sublane multiple for x blocks

    # Pad the batch so packed rows are a whole number of sublane groups.
    row_unit = sub * r
    n_pad = (-N) % row_unit
    if n_pad:
        x = jnp.pad(x, ((0, n_pad), (0, 0)))
    n_total = N + n_pad
    np_rows = n_total // r
    kf, kc = r * F, r * C

    if r > 1:
        eye_r = jnp.eye(r, dtype=jnp.float32)
        w_k = jnp.kron(eye_r, w)                                   # (r*F, r*C) block-diag W
        b_k = jnp.tile(b, (1, r))                                  # (1, r*C)
        j_k = jnp.kron(eye_r, jnp.ones((C, C), jnp.float32))       # (r*C, r*C) block-diag ones
        x_k = x.reshape(np_rows, kf)                               # free row-major view
    else:
        w_k, b_k, x_k, j_k = w, b, x, None

    # Generation-aware VMEM budget + explicit scoped limit.
    cap = _vmem_capacity_bytes()
    vmem_limit = max(32 * 1024 * 1024,
                     min(int(cap * 0.75), cap - 16 * 1024 * 1024))

    w_bytes = 4 * kf * kc
    b_bytes = 4 * kc
    j_bytes = 4 * kc * kc if r > 1 else 0
    # Grid-invariant operands are still double-buffered by default; budget for it.
    # TODO(synk): pipeline_mode=pl.Buffered(1) on the W/b/J specs would reclaim
    # half of that, but is negligible at small F.
    fixed_bytes = 2 * (w_bytes + b_bytes + j_bytes)
    in_row_bytes = kf * itemsize
    out_row_bytes = kc * 4
    tile = _choose_tile_rows(np_rows, in_row_bytes, out_row_bytes,
                             fixed_bytes, vmem_limit, sub)
    grid = (pl.cdiv(np_rows, tile),)

    flops = 2 * n_total * F * C + (2 * np_rows * kc * kc if r > 1 else 0)
    cost = pl.CostEstimate(
        flops=int(flops),
        transcendentals=int(3 * n_total * C),          # exp + two EUP reciprocals per prob
        bytes_accessed=int(itemsize * n_total * F
                           + 4 * (kf * kc + kc + j_bytes // 4 + n_total * C)),
    )

    common = dict(
        out_shape=jax.ShapeDtypeStruct((np_rows, kc), jnp.float32),
        grid=grid,
        out_specs=pl.BlockSpec((tile, kc), lambda i: (i, 0)),      # lane-dense when r*C=128
        compiler_params=pltpu.CompilerParams(
            dimension_semantics=("parallel",),                     # shard batch across TCs
            vmem_limit_bytes=int(vmem_limit),
        ),
        cost_estimate=cost,
    )

    if r > 1:
        probs_packed = pl.pallas_call(
            _packed_kernel,
            in_specs=[
                pl.BlockSpec((tile, kf), lambda i: (i, 0)),        # streamed packed x tiles
                pl.BlockSpec((kf, kc), lambda i: (0, 0)),          # block-diag W: VMEM-resident
                pl.BlockSpec((1, kc), lambda i: (0, 0)),           # tiled intercepts
                pl.BlockSpec((kc, kc), lambda i: (0, 0)),          # block-diag ones (row sums)
            ],
            **common,
        )(x_k, w_k, b_k, j_k)
    else:
        probs_packed = pl.pallas_call(
            _unpacked_kernel,
            in_specs=[
                pl.BlockSpec((tile, kf), lambda i: (i, 0)),
                pl.BlockSpec((kf, kc), lambda i: (0, 0)),
                pl.BlockSpec((1, kc), lambda i: (0, 0)),
            ],
            **common,
        )(x_k, w_k, b_k)

    # (Np, r*C) -> (N_pad, C) is a free row-major view; drop the padded rows.
    probs = probs_packed.reshape(n_total, C)[:N]
    # argmax(probs) == argmax(logits): sigmoid is monotone and the normalization
    # is a uniform positive per-row scale; computing it here keeps the kernel's
    # store lane-dense and avoids a lane-sparse (N,1) output.
    preds = jnp.argmax(probs, axis=1).astype(jnp.int32)
    return preds, probs


# TODO(synk): other LinearModel modes (multinomial softmax, modified_huber
# clipping with zero-row handling, regression exp/identity, binary-class concat,
# explicit class-label index_select) are config branches not exercised here.


# ----------------------------------------------------------------------------- test
if __name__ == "__main__":
    def reference(x, w, b):
        logits = x.astype(jnp.float32) @ w + b
        p = jax.nn.sigmoid(logits)
        p = p / jnp.sum(p, axis=1, keepdims=True)
        return jnp.argmax(p, axis=1).astype(jnp.int32), p

    def check(preds, probs, probs_ref, tol=2e-3):
        assert probs.shape == probs_ref.shape
        assert bool(jnp.allclose(probs, probs_ref, atol=tol, rtol=tol)), "probabilities mismatch"
        # Predicted class must carry a (near-)maximal reference probability
        # (approx reciprocals can flip exact ties at ~2^-12 relative error).
        chosen = jnp.take_along_axis(probs_ref, preds[:, None], axis=1)[:, 0]
        assert bool(jnp.all(jnp.max(probs_ref, axis=1) - chosen <= 5e-3)), "predictions mismatch"

    key = jax.random.PRNGKey(0)
    k1, k2, k3, k4, k5, k6 = jax.random.split(key, 6)

    # Case 1: lane-packed path (C divides 128 -> r = 32), small shapes.
    N, F, C = 256, 32, 4
    x = jax.random.normal(k1, (N, F), dtype=jnp.float32)
    coefficients = jax.random.normal(k2, (F, C), dtype=jnp.float32) * 0.1
    intercepts = jax.random.normal(k3, (C,), dtype=jnp.float32) * 0.1
    preds, probs = linear_model_forward(x, coefficients, intercepts)
    jax.block_until_ready((preds, probs))
    _, probs_ref = reference(x, coefficients, intercepts)
    assert preds.shape == (N,) and preds.dtype == jnp.int32
    check(preds, probs, probs_ref)

    # Case 2: fallback path (C = 3 does not divide 128) with a ragged batch.
    N2, F2, C2 = 10, 16, 3
    x2 = jax.random.normal(k4, (N2, F2), dtype=jnp.float32)
    coefficients2 = jax.random.normal(k5, (F2, C2), dtype=jnp.float32) * 0.1
    intercepts2 = jax.random.normal(k6, (C2,), dtype=jnp.float32) * 0.1
    preds2, probs2 = linear_model_forward(x2, coefficients2, intercepts2)
    jax.block_until_ready((preds2, probs2))
    _, probs2_ref = reference(x2, coefficients2, intercepts2)
    assert preds2.shape == (N2,) and preds2.dtype == jnp.int32
    check(preds2, probs2, probs2_ref)

    print("KERNEL_OK")
</pallas_src>

<mosaic_0001>
module attributes {stable_mosaic.version = 11 : i64} {
  func.func @_packed_kernel(%arg0: i32, %arg1: memref<8x1024xf32, #tpu.memory_space<vmem>>, %arg2: memref<1024x128xf32, #tpu.memory_space<vmem>>, %arg3: memref<1x128xf32, #tpu.memory_space<vmem>>, %arg4: memref<128x128xf32, #tpu.memory_space<vmem>>, %arg5: memref<8x128xf32, #tpu.memory_space<vmem>>) attributes {dimension_semantics = [#tpu.dimension_semantics<parallel>], iteration_bounds = array<i64: 1>, scalar_prefetch = 0 : i64, scratch_operands = 0 : i64, tpu.core_type = #tpu.core_type<tc>, window_params = [{transform_indices = @transform_0, window_bounds = array<i64: 8, 1024>}, {pipeline_mode = #tpu.pipeline_mode<synchronous>, transform_indices = @transform_1, window_bounds = array<i64: 1024, 128>}, {pipeline_mode = #tpu.pipeline_mode<synchronous>, transform_indices = @transform_2, window_bounds = array<i64: 1, 128>}, {pipeline_mode = #tpu.pipeline_mode<synchronous>, transform_indices = @transform_3, window_bounds = array<i64: 128, 128>}, {transform_indices = @transform_4, window_bounds = array<i64: 8, 128>}]} {
    %c0 = arith.constant 0 : index
    %c0_0 = arith.constant 0 : index
    %0 = vector.load %arg1[%c0, %c0_0] : memref<8x1024xf32, #tpu.memory_space<vmem>>, vector<8x1024xf32>
    %c0_1 = arith.constant 0 : index
    %c0_2 = arith.constant 0 : index
    %1 = vector.load %arg2[%c0_1, %c0_2] : memref<1024x128xf32, #tpu.memory_space<vmem>>, vector<1024x128xf32>
    %cst = arith.constant dense<0.000000e+00> : vector<8x128xf32>
    %2 = tpu.matmul %0, %1, %cst {dimension_numbers = #tpu.dot_dimension_numbers<[1], [0], [0], [1], [0, 0, 1, 1], [], []>} : vector<8x1024xf32>, vector<1024x128xf32>, vector<8x128xf32> -> vector<8x128xf32>
    %c0_3 = arith.constant 0 : index
    %c0_4 = arith.constant 0 : index
    %3 = vector.load %arg3[%c0_3, %c0_4] : memref<1x128xf32, #tpu.memory_space<vmem>>, vector<1x128xf32>
    %4 = vector.broadcast %3 : vector<1x128xf32> to vector<8x128xf32>
    %5 = arith.addf %2, %4 : vector<8x128xf32>
    %6 = math.absf %5 : vector<8x128xf32>
    %cst_5 = arith.constant 0.000000e+00 : f32
    %7 = vector.broadcast %cst_5 : f32 to vector<8x128xf32>
    %8 = arith.subf %7, %6 : vector<8x128xf32>
    %9 = math.exp %8 : vector<8x128xf32>
    %cst_6 = arith.constant 1.000000e+00 : f32
    %10 = vector.broadcast %cst_6 : f32 to vector<8x128xf32>
    %11 = arith.addf %10, %9 : vector<8x128xf32>
    %12 = tpu.reciprocal %11 {approx = true} : vector<8x128xf32> -> vector<8x128xf32>
    %cst_7 = arith.constant 0.000000e+00 : f32
    %13 = vector.broadcast %cst_7 : f32 to vector<8x128xf32>
    %14 = arith.cmpf oge, %5, %13 : vector<8x128xf32>
    %15 = arith.mulf %9, %12 : vector<8x128xf32>
    %16 = arith.select %14, %12, %15 : vector<8x128xi1>, vector<8x128xf32>
    %c0_8 = arith.constant 0 : index
    %c0_9 = arith.constant 0 : index
    %17 = vector.load %arg4[%c0_8, %c0_9] : memref<128x128xf32, #tpu.memory_space<vmem>>, vector<128x128xf32>
    %cst_10 = arith.constant dense<0.000000e+00> : vector<8x128xf32>
    %18 = tpu.matmul %16, %17, %cst_10 {dimension_numbers = #tpu.dot_dimension_numbers<[1], [0], [0], [1], [0, 0, 1, 1], [], []>} : vector<8x128xf32>, vector<128x128xf32>, vector<8x128xf32> -> vector<8x128xf32>
    %cst_11 = arith.constant 1.000000e-30 : f32
    %19 = vector.broadcast %cst_11 : f32 to vector<8x128xf32>
    %20 = arith.maximumf %18, %19 : vector<8x128xf32>
    %21 = tpu.reciprocal %20 {approx = true} : vector<8x128xf32> -> vector<8x128xf32>
    %22 = arith.mulf %16, %21 : vector<8x128xf32>
    %c0_12 = arith.constant 0 : index
    %c0_13 = arith.constant 0 : index
    %23 = vector.load %arg5[%c0_12, %c0_13] : memref<8x128xf32, #tpu.memory_space<vmem>>, vector<8x128xf32>
    tpu.vector_store %arg5[%c0_12, %c0_13], %22 {strides = array<i32>} : memref<8x128xf32, #tpu.memory_space<vmem>>, vector<8x128xf32>,
    return
  }
  func.func @transform_0(%arg0: i32) -> (i32, i32) {
    %c0_i32 = arith.constant 0 : i32
    %c0_i32_0 = arith.constant 0 : i32
    return %arg0, %c0_i32 : i32, i32
  }
  func.func @transform_1(%arg0: i32) -> (i32, i32) {
    %c0_i32 = arith.constant 0 : i32
    %c0_i32_0 = arith.constant 0 : i32
    %c0_i32_1 = arith.constant 0 : i32
    return %c0_i32, %c0_i32_0 : i32, i32
  }
  func.func @transform_2(%arg0: i32) -> (i32, i32) {
    %c0_i32 = arith.constant 0 : i32
    %c0_i32_0 = arith.constant 0 : i32
    %c0_i32_1 = arith.constant 0 : i32
    return %c0_i32, %c0_i32_0 : i32, i32
  }
  func.func @transform_3(%arg0: i32) -> (i32, i32) {
    %c0_i32 = arith.constant 0 : i32
    %c0_i32_0 = arith.constant 0 : i32
    %c0_i32_1 = arith.constant 0 : i32
    return %c0_i32, %c0_i32_0 : i32, i32
  }
  func.func @transform_4(%arg0: i32) -> (i32, i32) {
    %c0_i32 = arith.constant 0 : i32
    %c0_i32_0 = arith.constant 0 : i32
    return %arg0, %c0_i32 : i32, i32
  }
}

</mosaic_0001>

<llo_original>
// kernel: tpu_custom_call.1
$region0: #{tpu_custom_call.1}
  #allocation0 [shape = 'u32[]', space=smem, size = 0x4, offset = 0x4, fixed_abs, tag = 'smem constant byte address 0x4 - core index']
  #allocation1 [shape = 'u32[144,128]{1,0:T(1,128)}', space=vmem, size = 0x12000, scoped, tag = 'internal scratch']
  %s0 = inlined_call_operand.hbm [shape: f32[8,1024], index: 0, kind: input, shape index: {}]
  %s1 = inlined_call_operand.hbm [shape: f32[1024,128], index: 1, kind: input, shape index: {}]
  %s2 = inlined_call_operand.vmem [shape: f32[1,128], index: 2, kind: input, shape index: {}]
  %s3 = inlined_call_operand.hbm [shape: f32[128,128], index: 3, kind: input, shape index: {}]
  %s4 = inlined_call_operand.hbm [shape: f32[8,128], index: 4, kind: output, shape index: {}]
  %s5 = sld [smem:[#allocation0]]
  $region38: #{tpu_custom_call.1} parent=0
    _
  %s7 = ssub.s32 1, %s5
  %s8 = scalar_select 0, %s7, %s5
  $region1: #{tpu_custom_call.1} parent=0
    #allocation2 [shape = 'u8[32768]{0}', space=vmem, size = 0x8000, scoped, tag = 'input window, operand 0, single buffered']
    #allocation3 [shape = 's32[1]{0}', space=sflag, size = 0x4, scoped, tag = 'scoped memory for tpu_custom_call.1']
    #allocation4 [shape = 's32[1]{0}', space=sflag, size = 0x4, scoped, tag = 'scoped memory for tpu_custom_call.1']
    #allocation5 [shape = 'u8[524288]{0}', space=vmem, size = 0x80000, scoped, tag = 'input window, operand 1, single buffered']
    #allocation6 [shape = 's32[1]{0}', space=sflag, size = 0x4, scoped, tag = 'scoped memory for tpu_custom_call.1']
    #allocation7 [shape = 'u8[65536]{0}', space=vmem, size = 0x10000, scoped, tag = 'input window, operand 3, single buffered']
    #allocation8 [shape = 'u8[4096]{0}', space=vmem, size = 0x1000, scoped, tag = 'output window, operand 0, single buffered']
    %9 = vsyncpa [#allocation3], 0
    %10 = vsyncpa [#allocation6], 0
    %11 = vsyncpa [#allocation4], 0
    // Predicated region
    $region2: #{tpu_custom_call.1} parent=1 // pred_check
      _
    $region3: #{tpu_custom_call.1} parent=1 // pred_check_branch
      %13 = sbr.rel (0) target = $region5
    $region4: #{tpu_custom_call.1} parent=1 // pred_region
      %s15 = ssub.s32 1024, 1024
      %16 = vsyncadd [#allocation3], %s15
      %s18 = sshll.u32 [#allocation2], 4
      %s19 = int_to_ptr.vmem [resolvable:$true] %s18
      %21 = dma.hbm_to_vmem [thread:$0]  %s0, 1024, %s19, [#allocation3]
    $region5: #{tpu_custom_call.1} parent=1 // pred_fallthru
      _
    // Predicated region
    $region6: #{tpu_custom_call.1} parent=1 // pred_check
      _
    $region7: #{tpu_custom_call.1} parent=1 // pred_check_branch
      %23 = sbr.rel (0) target = $region9
    $region8: #{tpu_custom_call.1} parent=1 // pred_region
      %s25 = ssub.s32 16384, 16384
      %26 = vsyncadd [#allocation6], %s25
      %s27 = sshll.u32 [#allocation5], 4
      %s28 = int_to_ptr.vmem [resolvable:$true] %s27
      %33 = dma.hbm_to_vmem [thread:$0]  %s1, 16384, %s28, [#allocation6], 128, 128, 8
    $region9: #{tpu_custom_call.1} parent=1 // pred_fallthru
      _
    // Predicated region
    $region10: #{tpu_custom_call.1} parent=1 // pred_check
      _
    $region11: #{tpu_custom_call.1} parent=1 // pred_check_branch
      %35 = sbr.rel (0) target = $region13
    $region12: #{tpu_custom_call.1} parent=1 // pred_region
      _
    $region13: #{tpu_custom_call.1} parent=1 // pred_fallthru
      _
    // Predicated region
    $region14: #{tpu_custom_call.1} parent=1 // pred_check
      _
    $region15: #{tpu_custom_call.1} parent=1 // pred_check_branch
      %37 = sbr.rel (0) target = $region17
    $region16: #{tpu_custom_call.1} parent=1 // pred_region
      %s39 = ssub.s32 2048, 2048
      %40 = vsyncadd [#allocation6], %s39
      %s41 = sshll.u32 [#allocation7], 4
      %s42 = int_to_ptr.vmem [resolvable:$true] %s41
      %47 = dma.hbm_to_vmem [thread:$0]  %s3, 2048, %s42, [#allocation6], 128, 128, 8
    $region17: #{tpu_custom_call.1} parent=1 // pred_fallthru
      _
    // Predicated region
    $region18: #{tpu_custom_call.1} parent=1 // pred_check
      _
    $region19: #{tpu_custom_call.1} parent=1 // pred_check_branch
      %49 = sbr.rel (0) target = $region21
    $region20: #{tpu_custom_call.1} parent=1 // pred_region
      %50 = dma.done [#allocation3], 1024
    $region21: #{tpu_custom_call.1} parent=1 // pred_fallthru
      _
    // Predicated region
    $region22: #{tpu_custom_call.1} parent=1 // pred_check
      _
    $region23: #{tpu_custom_call.1} parent=1 // pred_check_branch
      %52 = sbr.rel (0) target = $region25
    $region24: #{tpu_custom_call.1} parent=1 // pred_region
      %53 = dma.done [#allocation6], 16384
    $region25: #{tpu_custom_call.1} parent=1 // pred_fallthru
      _
    // Predicated region
    $region26: #{tpu_custom_call.1} parent=1 // pred_check
      _
    $region27: #{tpu_custom_call.1} parent=1 // pred_check_branch
      %55 = sbr.rel (0) target = $region29
    $region28: #{tpu_custom_call.1} parent=1 // pred_region
      %56 = dma.done [#allocation6], 2048
    $region29: #{tpu_custom_call.1} parent=1 // pred_fallthru
      _
    %v57 = vld [vmem:[#allocation2] sm:$0xff]
    %v58 = vld [vmem:[#allocation2 + $0x8] sm:$0xff]
    %v59 = vld [vmem:[#allocation2 + $0x10] sm:$0xff]
    %v60 = vld [vmem:[#allocation2 + $0x18] sm:$0xff]
    %v61 = vld [vmem:[#allocation2 + $0x20] sm:$0xff]
    %v62 = vld [vmem:[#allocation2 + $0x28] sm:$0xff]
    %v63 = vld [vmem:[#allocation2 + $0x30] sm:$0xff]
    %v64 = vld [vmem:[#allocation2 + $0x38] sm:$0xff]
    %v65 = vld [vmem:[#allocation5] sm:$0xff]
    %v66 = vld [vmem:[#allocation5 + $0x8] sm:$0xff]
    %v67 = vld [vmem:[#allocation5 + $0x10] sm:$0xff]
    %v68 = vld [vmem:[#allocation5 + $0x18] sm:$0xff]
    %v69 = vld [vmem:[#allocation5 + $0x20] sm:$0xff]
    %v70 = vld [vmem:[#allocation5 + $0x28] sm:$0xff]
    %v71 = vld [vmem:[#allocation5 + $0x30] sm:$0xff]
    %v72 = vld [vmem:[#allocation5 + $0x38] sm:$0xff]
    %v73 = vld [vmem:[#allocation5 + $0x40] sm:$0xff]
    %v74 = vld [vmem:[#allocation5 + $0x48] sm:$0xff]
    %v75 = vld [vmem:[#allocation5 + $0x50] sm:$0xff]
    %v76 = vld [vmem:[#allocation5 + $0x58] sm:$0xff]
    %v77 = vld [vmem:[#allocation5 + $0x60] sm:$0xff]
    %v78 = vld [vmem:[#allocation5 + $0x68] sm:$0xff]
    %v79 = vld [vmem:[#allocation5 + $0x70] sm:$0xff]
    %v80 = vld [vmem:[#allocation5 + $0x78] sm:$0xff]
    %v81 = vld [vmem:[#allocation5 + $0x80] sm:$0xff]
    %v82 = vld [vmem:[#allocation5 + $0x88] sm:$0xff]
    %v83 = vld [vmem:[#allocation5 + $0x90] sm:$0xff]
    %v84 = vld [vmem:[#allocation5 + $0x98] sm:$0xff]
    %v85 = vld [vmem:[#allocation5 + $0xa0] sm:$0xff]
    %v86 = vld [vmem:[#allocation5 + $0xa8] sm:$0xff]
    %v87 = vld [vmem:[#allocation5 + $0xb0] sm:$0xff]
    %v88 = vld [vmem:[#allocation5 + $0xb8] sm:$0xff]
    %v89 = vld [vmem:[#allocation5 + $0xc0] sm:$0xff]
    %v90 = vld [vmem:[#allocation5 + $0xc8] sm:$0xff]
    %v91 = vld [vmem:[#allocation5 + $0xd0] sm:$0xff]
    %v92 = vld [vmem:[#allocation5 + $0xd8] sm:$0xff]
    %v93 = vld [vmem:[#allocation5 + $0xe0] sm:$0xff]
    %v94 = vld [vmem:[#allocation5 + $0xe8] sm:$0xff]
    %v95 = vld [vmem:[#allocation5 + $0xf0] sm:$0xff]
    %v96 = vld [vmem:[#allocation5 + $0xf8] sm:$0xff]
    %v97 = vld [vmem:[#allocation5 + $0x100] sm:$0xff]
    %v98 = vld [vmem:[#allocation5 + $0x108] sm:$0xff]
    %v99 = vld [vmem:[#allocation5 + $0x110] sm:$0xff]
    %v100 = vld [vmem:[#allocation5 + $0x118] sm:$0xff]
    %v101 = vld [vmem:[#allocation5 + $0x120] sm:$0xff]
    %v102 = vld [vmem:[#allocation5 + $0x128] sm:$0xff]
    %v103 = vld [vmem:[#allocation5 + $0x130] sm:$0xff]
    %v104 = vld [vmem:[#allocation5 + $0x138] sm:$0xff]
    %v105 = vld [vmem:[#allocation5 + $0x140] sm:$0xff]
    %v106 = vld [vmem:[#allocation5 + $0x148] sm:$0xff]
    %v107 = vld [vmem:[#allocation5 + $0x150] sm:$0xff]
    %v108 = vld [vmem:[#allocation5 + $0x158] sm:$0xff]
    %v109 = vld [vmem:[#allocation5 + $0x160] sm:$0xff]
    %v110 = vld [vmem:[#allocation5 + $0x168] sm:$0xff]
    %v111 = vld [vmem:[#allocation5 + $0x170] sm:$0xff]
    %v112 = vld [vmem:[#allocation5 + $0x178] sm:$0xff]
    %v113 = vld [vmem:[#allocation5 + $0x180] sm:$0xff]
    %v114 = vld [vmem:[#allocation5 + $0x188] sm:$0xff]
    %v115 = vld [vmem:[#allocation5 + $0x190] sm:$0xff]
    %v116 = vld [vmem:[#allocation5 + $0x198] sm:$0xff]
    %v117 = vld [vmem:[#allocation5 + $0x1a0] sm:$0xff]
    %v118 = vld [vmem:[#allocation5 + $0x1a8] sm:$0xff]
    %v119 = vld [vmem:[#allocation5 + $0x1b0] sm:$0xff]
    %v120 = vld [vmem:[#allocation5 + $0x1b8] sm:$0xff]
    %v121 = vld [vmem:[#allocation5 + $0x1c0] sm:$0xff]
    %v122 = vld [vmem:[#allocation5 + $0x1c8] sm:$0xff]
    %v123 = vld [vmem:[#allocation5 + $0x1d0] sm:$0xff]
    %v124 = vld [vmem:[#allocation5 + $0x1d8] sm:$0xff]
    %v125 = vld [vmem:[#allocation5 + $0x1e0] sm:$0xff]
    %v126 = vld [vmem:[#allocation5 + $0x1e8] sm:$0xff]
    %v127 = vld [vmem:[#allocation5 + $0x1f0] sm:$0xff]
    %v128 = vld [vmem:[#allocation5 + $0x1f8] sm:$0xff]
    %v129 = vld [vmem:[#allocation5 + $0x200] sm:$0xff]
    %v130 = vld [vmem:[#allocation5 + $0x208] sm:$0xff]
    %v131 = vld [vmem:[#allocation5 + $0x210] sm:$0xff]
    %v132 = vld [vmem:[#allocation5 + $0x218] sm:$0xff]
    %v133 = vld [vmem:[#allocation5 + $0x220] sm:$0xff]
    %v134 = vld [vmem:[#allocation5 + $0x228] sm:$0xff]
    %v135 = vld [vmem:[#allocation5 + $0x230] sm:$0xff]
    %v136 = vld [vmem:[#allocation5 + $0x238] sm:$0xff]
    %v137 = vld [vmem:[#allocation5 + $0x240] sm:$0xff]
    %v138 = vld [vmem:[#allocation5 + $0x248] sm:$0xff]
    %v139 = vld [vmem:[#allocation5 + $0x250] sm:$0xff]
    %v140 = vld [vmem:[#allocation5 + $0x258] sm:$0xff]
    %v141 = vld [vmem:[#allocation5 + $0x260] sm:$0xff]
    %v142 = vld [vmem:[#allocation5 + $0x268] sm:$0xff]
    %v143 = vld [vmem:[#allocation5 + $0x270] sm:$0xff]
    %v144 = vld [vmem:[#allocation5 + $0x278] sm:$0xff]
    %v145 = vld [vmem:[#allocation5 + $0x280] sm:$0xff]
    %v146 = vld [vmem:[#allocation5 + $0x288] sm:$0xff]
    %v147 = vld [vmem:[#allocation5 + $0x290] sm:$0xff]
    %v148 = vld [vmem:[#allocation5 + $0x298] sm:$0xff]
    %v149 = vld [vmem:[#allocation5 + $0x2a0] sm:$0xff]
    %v150 = vld [vmem:[#allocation5 + $0x2a8] sm:$0xff]
    %v151 = vld [vmem:[#allocation5 + $0x2b0] sm:$0xff]
    %v152 = vld [vmem:[#allocation5 + $0x2b8] sm:$0xff]
    %v153 = vld [vmem:[#allocation5 + $0x2c0] sm:$0xff]
    %v154 = vld [vmem:[#allocation5 + $0x2c8] sm:$0xff]
    %v155 = vld [vmem:[#allocation5 + $0x2d0] sm:$0xff]
    %v156 = vld [vmem:[#allocation5 + $0x2d8] sm:$0xff]
    %v157 = vld [vmem:[#allocation5 + $0x2e0] sm:$0xff]
    %v158 = vld [vmem:[#allocation5 + $0x2e8] sm:$0xff]
    %v159 = vld [vmem:[#allocation5 + $0x2f0] sm:$0xff]
    %v160 = vld [vmem:[#allocation5 + $0x2f8] sm:$0xff]
    %v161 = vld [vmem:[#allocation5 + $0x300] sm:$0xff]
    %v162 = vld [vmem:[#allocation5 + $0x308] sm:$0xff]
    %v163 = vld [vmem:[#allocation5 + $0x310] sm:$0xff]
    %v164 = vld [vmem:[#allocation5 + $0x318] sm:$0xff]
    %v165 = vld [vmem:[#allocation5 + $0x320] sm:$0xff]
    %v166 = vld [vmem:[#allocation5 + $0x328] sm:$0xff]
    %v167 = vld [vmem:[#allocation5 + $0x330] sm:$0xff]
    %v168 = vld [vmem:[#allocation5 + $0x338] sm:$0xff]
    %v169 = vld [vmem:[#allocation5 + $0x340] sm:$0xff]
    %v170 = vld [vmem:[#allocation5 + $0x348] sm:$0xff]
    %v171 = vld [vmem:[#allocation5 + $0x350] sm:$0xff]
    %v172 = vld [vmem:[#allocation5 + $0x358] sm:$0xff]
    %v173 = vld [vmem:[#allocation5 + $0x360] sm:$0xff]
    %v174 = vld [vmem:[#allocation5 + $0x368] sm:$0xff]
    %v175 = vld [vmem:[#allocation5 + $0x370] sm:$0xff]
    %v176 = vld [vmem:[#allocation5 + $0x378] sm:$0xff]
    %v177 = vld [vmem:[#allocation5 + $0x380] sm:$0xff]
    %v178 = vld [vmem:[#allocation5 + $0x388] sm:$0xff]
    %v179 = vld [vmem:[#allocation5 + $0x390] sm:$0xff]
    %v180 = vld [vmem:[#allocation5 + $0x398] sm:$0xff]
    %v181 = vld [vmem:[#allocation5 + $0x3a0] sm:$0xff]
    %v182 = vld [vmem:[#allocation5 + $0x3a8] sm:$0xff]
    %v183 = vld [vmem:[#allocation5 + $0x3b0] sm:$0xff]
    %v184 = vld [vmem:[#allocation5 + $0x3b8] sm:$0xff]
    %v185 = vld [vmem:[#allocation5 + $0x3c0] sm:$0xff]
    %v186 = vld [vmem:[#allocation5 + $0x3c8] sm:$0xff]
    %v187 = vld [vmem:[#allocation5 + $0x3d0] sm:$0xff]
    %v188 = vld [vmem:[#allocation5 + $0x3d8] sm:$0xff]
    %v189 = vld [vmem:[#allocation5 + $0x3e0] sm:$0xff]
    %v190 = vld [vmem:[#allocation5 + $0x3e8] sm:$0xff]
    %v191 = vld [vmem:[#allocation5 + $0x3f0] sm:$0xff]
    %v192 = vld [vmem:[#allocation5 + $0x3f8] sm:$0xff]
    %v193 = vld [vmem:[%s2] sm:$0x1]
    %v195 = vlaneseq
    %v196 = vshrl.u32 %v195, 7
    %v197 = vsub.s32 0, %v196
    %v198 = vrot.slane %v193, %v197
    %200 = vmatprep.subr.mxu0 0.0
    %201 = vmatpush1.msra.mxu0 %v65
    %202 = vmatprep.subr.mxu0 0.0
    %203 = vmatpush1.msra.mxu0 %v66
    %204 = vmatprep.subr.mxu0 0.0
    %205 = vmatpush1.msra.mxu0 %v67
    %206 = vmatprep.subr.mxu0 0.0
    %207 = vmatpush1.msra.mxu0 %v68
    %208 = vmatprep.subr.mxu0 0.0
    %209 = vmatpush1.msra.mxu0 %v69
    %210 = vmatprep.subr.mxu0 0.0
    %211 = vmatpush1.msra.mxu0 %v70
    %212 = vmatprep.subr.mxu0 0.0
    %213 = vmatpush1.msra.mxu0 %v71
    %214 = vmatprep.subr.mxu0 0.0
    %215 = vmatpush1.msra.mxu0 %v72
    %216 = vmatprep.subr.mxu0 0.0
    %217 = vmatpush1.msra.mxu0 %v73
    %218 = vmatprep.subr.mxu0 0.0
    %219 = vmatpush1.msra.mxu0 %v74
    %220 = vmatprep.subr.mxu0 0.0
    %221 = vmatpush1.msra.mxu0 %v75
    %222 = vmatprep.subr.mxu0 0.0
    %223 = vmatpush1.msra.mxu0 %v76
    %224 = vmatprep.subr.mxu0 0.0
    %225 = vmatpush1.msra.mxu0 %v77
    %226 = vmatprep.subr.mxu0 0.0
    %227 = vmatpush1.msra.mxu0 %v78
    %228 = vmatprep.subr.mxu0 0.0
    %229 = vmatpush1.msra.mxu0 %v79
    %230 = vmatprep.subr.mxu0 0.0
    %231 = vmatpush1.msra.mxu0 %v80
    %232 = vmatprep.subr.mxu0 0.0
    %233 = vmatpush1.msra.mxu0 %v81
    %234 = vmatprep.subr.mxu0 0.0
    %235 = vmatpush1.msra.mxu0 %v82
    %236 = vmatprep.subr.mxu0 0.0
    %237 = vmatpush1.msra.mxu0 %v83
    %238 = vmatprep.subr.mxu0 0.0
    %239 = vmatpush1.msra.mxu0 %v84
    %240 = vmatprep.subr.mxu0 0.0
    %241 = vmatpush1.msra.mxu0 %v85
    %242 = vmatprep.subr.mxu0 0.0
    %243 = vmatpush1.msra.mxu0 %v86
    %244 = vmatprep.subr.mxu0 0.0
    %245 = vmatpush1.msra.mxu0 %v87
    %246 = vmatprep.subr.mxu0 0.0
    %247 = vmatpush1.msra.mxu0 %v88
    %248 = vmatprep.subr.mxu0 0.0
    %249 = vmatpush1.msra.mxu0 %v89
    %250 = vmatprep.subr.mxu0 0.0
    %251 = vmatpush1.msra.mxu0 %v90
    %252 = vmatprep.subr.mxu0 0.0
    %253 = vmatpush1.msra.mxu0 %v91
    %254 = vmatprep.subr.mxu0 0.0
    %255 = vmatpush1.msra.mxu0 %v92
    %256 = vmatprep.subr.mxu0 0.0
    %257 = vmatpush1.msra.mxu0 %v93
    %258 = vmatprep.subr.mxu0 0.0
    %259 = vmatpush1.msra.mxu0 %v94
    %260 = vmatprep.subr.mxu0 0.0
    %261 = vmatpush1.msra.mxu0 %v95
    %262 = vmatprep.subr.mxu0 0.0
    %263 = vmatpush1.msra.mxu0 %v96
    %264 = vmatprep.mubr.f32.mxu0 %v58
    %265 = vmatmul.mubr.f32.gmra.mrb[0].mxu0 %v57
    %v266 = vpop.f32.mrb[0].mxu0
    %v267 = vadd.f32 %v198, %v266
    %v268 = vpop.f32.mrb[0].mxu0
    %269 = vdwg.mxu0
    %270 = vmatprep.subr.mxu0 0.0
    %271 = vmatpush1.msra.mxu0 %v97
    %272 = vmatprep.subr.mxu0 0.0
    %273 = vmatpush1.msra.mxu0 %v98
    %274 = vmatprep.subr.mxu0 0.0
    %275 = vmatpush1.msra.mxu0 %v99
    %276 = vmatprep.subr.mxu0 0.0
    %277 = vmatpush1.msra.mxu0 %v100
    %278 = vmatprep.subr.mxu0 0.0
    %279 = vmatpush1.msra.mxu0 %v101
    %280 = vmatprep.subr.mxu0 0.0
    %281 = vmatpush1.msra.mxu0 %v102
    %282 = vmatprep.subr.mxu0 0.0
    %283 = vmatpush1.msra.mxu0 %v103
    %284 = vmatprep.subr.mxu0 0.0
    %285 = vmatpush1.msra.mxu0 %v104
    %286 = vmatprep.subr.mxu0 0.0
    %287 = vmatpush1.msra.mxu0 %v105
    %288 = vmatprep.subr.mxu0 0.0
    %289 = vmatpush1.msra.mxu0 %v106
    %290 = vmatprep.subr.mxu0 0.0
    %291 = vmatpush1.msra.mxu0 %v107
    %292 = vmatprep.subr.mxu0 0.0
    %293 = vmatpush1.msra.mxu0 %v108
    %294 = vmatprep.subr.mxu0 0.0
    %295 = vmatpush1.msra.mxu0 %v109
    %296 = vmatprep.subr.mxu0 0.0
    %297 = vmatpush1.msra.mxu0 %v110
    %298 = vmatprep.subr.mxu0 0.0
    %299 = vmatpush1.msra.mxu0 %v111
    %300 = vmatprep.subr.mxu0 0.0
    %301 = vmatpush1.msra.mxu0 %v112
    %302 = vmatprep.subr.mxu0 0.0
    %303 = vmatpush1.msra.mxu0 %v113
    %304 = vmatprep.subr.mxu0 0.0
    %305 = vmatpush1.msra.mxu0 %v114
    %306 = vmatprep.subr.mxu0 0.0
    %307 = vmatpush1.msra.mxu0 %v115
    %308 = vmatprep.subr.mxu0 0.0
    %309 = vmatpush1.msra.mxu0 %v116
    %310 = vmatprep.subr.mxu0 0.0
    %311 = vmatpush1.msra.mxu0 %v117
    %312 = vmatprep.subr.mxu0 0.0
    %313 = vmatpush1.msra.mxu0 %v118
    %314 = vmatprep.subr.mxu0 0.0
    %315 = vmatpush1.msra.mxu0 %v119
    %316 = vmatprep.subr.mxu0 0.0
    %317 = vmatpush1.msra.mxu0 %v120
    %318 = vmatprep.subr.mxu0 0.0
    %319 = vmatpush1.msra.mxu0 %v121
    %320 = vmatprep.subr.mxu0 0.0
    %321 = vmatpush1.msra.mxu0 %v122
    %322 = vmatprep.subr.mxu0 0.0
    %323 = vmatpush1.msra.mxu0 %v123
    %324 = vmatprep.subr.mxu0 0.0
    %325 = vmatpush1.msra.mxu0 %v124
    %326 = vmatprep.subr.mxu0 0.0
    %327 = vmatpush1.msra.mxu0 %v125
    %328 = vmatprep.subr.mxu0 0.0
    %329 = vmatpush1.msra.mxu0 %v126
    %330 = vmatprep.subr.mxu0 0.0
    %331 = vmatpush1.msra.mxu0 %v127
    %332 = vmatprep.subr.mxu0 0.0
    %333 = vmatpush1.msra.mxu0 %v128
    %334 = vmatprep.mubr.f32.mxu0 %v60
    %335 = vmatmul.mubr.f32.gmra.mrb[0].mxu0 %v59
    %v336 = vpop.f32.mrb[0].mxu0
    %v337 = vadd.f32 %v267, %v336
    %v338 = vpop.f32.mrb[0].mxu0
    %339 = vdwg.mxu0
    %340 = vmatprep.subr.mxu0 0.0
    %341 = vmatpush1.msra.mxu0 %v129
    %342 = vmatprep.subr.mxu0 0.0
    %343 = vmatpush1.msra.mxu0 %v130
    %344 = vmatprep.subr.mxu0 0.0
    %345 = vmatpush1.msra.mxu0 %v131
    %346 = vmatprep.subr.mxu0 0.0
    %347 = vmatpush1.msra.mxu0 %v132
    %348 = vmatprep.subr.mxu0 0.0
    %349 = vmatpush1.msra.mxu0 %v133
    %350 = vmatprep.subr.mxu0 0.0
    %351 = vmatpush1.msra.mxu0 %v134
    %352 = vmatprep.subr.mxu0 0.0
    %353 = vmatpush1.msra.mxu0 %v135
    %354 = vmatprep.subr.mxu0 0.0
    %355 = vmatpush1.msra.mxu0 %v136
    %356 = vmatprep.subr.mxu0 0.0
    %357 = vmatpush1.msra.mxu0 %v137
    %358 = vmatprep.subr.mxu0 0.0
    %359 = vmatpush1.msra.mxu0 %v138
    %360 = vmatprep.subr.mxu0 0.0
    %361 = vmatpush1.msra.mxu0 %v139
    %362 = vmatprep.subr.mxu0 0.0
    %363 = vmatpush1.msra.mxu0 %v140
    %364 = vmatprep.subr.mxu0 0.0
    %365 = vmatpush1.msra.mxu0 %v141
    %366 = vmatprep.subr.mxu0 0.0
    %367 = vmatpush1.msra.mxu0 %v142
    %368 = vmatprep.subr.mxu0 0.0
    %369 = vmatpush1.msra.mxu0 %v143
    %370 = vmatprep.subr.mxu0 0.0
    %371 = vmatpush1.msra.mxu0 %v144
    %372 = vmatprep.subr.mxu0 0.0
    %373 = vmatpush1.msra.mxu0 %v145
    %374 = vmatprep.subr.mxu0 0.0
    %375 = vmatpush1.msra.mxu0 %v146
    %376 = vmatprep.subr.mxu0 0.0
    %377 = vmatpush1.msra.mxu0 %v147
    %378 = vmatprep.subr.mxu0 0.0
    %379 = vmatpush1.msra.mxu0 %v148
    %380 = vmatprep.subr.mxu0 0.0
    %381 = vmatpush1.msra.mxu0 %v149
    %382 = vmatprep.subr.mxu0 0.0
    %383 = vmatpush1.msra.mxu0 %v150
    %384 = vmatprep.subr.mxu0 0.0
    %385 = vmatpush1.msra.mxu0 %v151
    %386 = vmatprep.subr.mxu0 0.0
    %387 = vmatpush1.msra.mxu0 %v152
    %388 = vmatprep.subr.mxu0 0.0
    %389 = vmatpush1.msra.mxu0 %v153
    %390 = vmatprep.subr.mxu0 0.0
    %391 = vmatpush1.msra.mxu0 %v154
    %392 = vmatprep.subr.mxu0 0.0
    %393 = vmatpush1.msra.mxu0 %v155
    %394 = vmatprep.subr.mxu0 0.0
    %395 = vmatpush1.msra.mxu0 %v156
    %396 = vmatprep.subr.mxu0 0.0
    %397 = vmatpush1.msra.mxu0 %v157
    %398 = vmatprep.subr.mxu0 0.0
    %399 = vmatpush1.msra.mxu0 %v158
    %400 = vmatprep.subr.mxu0 0.0
    %401 = vmatpush1.msra.mxu0 %v159
    %402 = vmatprep.subr.mxu0 0.0
    %403 = vmatpush1.msra.mxu0 %v160
    %404 = vmatprep.mubr.f32.mxu0 %v62
    %405 = vmatmul.mubr.f32.gmra.mrb[0].mxu0 %v61
    %v406 = vpop.f32.mrb[0].mxu0
    %v407 = vadd.f32 %v337, %v406
    %v408 = vpop.f32.mrb[0].mxu0
    %409 = vdwg.mxu0
    %410 = vmatprep.subr.mxu0 0.0
    %411 = vmatpush1.msra.mxu0 %v161
    %412 = vmatprep.subr.mxu0 0.0
    %413 = vmatpush1.msra.mxu0 %v162
    %414 = vmatprep.subr.mxu0 0.0
    %415 = vmatpush1.msra.mxu0 %v163
    %416 = vmatprep.subr.mxu0 0.0
    %417 = vmatpush1.msra.mxu0 %v164
    %418 = vmatprep.subr.mxu0 0.0
    %419 = vmatpush1.msra.mxu0 %v165
    %420 = vmatprep.subr.mxu0 0.0
    %421 = vmatpush1.msra.mxu0 %v166
    %422 = vmatprep.subr.mxu0 0.0
    %423 = vmatpush1.msra.mxu0 %v167
    %424 = vmatprep.subr.mxu0 0.0
    %425 = vmatpush1.msra.mxu0 %v168
    %426 = vmatprep.subr.mxu0 0.0
    %427 = vmatpush1.msra.mxu0 %v169
    %428 = vmatprep.subr.mxu0 0.0
    %429 = vmatpush1.msra.mxu0 %v170
    %430 = vmatprep.subr.mxu0 0.0
    %431 = vmatpush1.msra.mxu0 %v171
    %432 = vmatprep.subr.mxu0 0.0
    %433 = vmatpush1.msra.mxu0 %v172
    %434 = vmatprep.subr.mxu0 0.0
    %435 = vmatpush1.msra.mxu0 %v173
    %436 = vmatprep.subr.mxu0 0.0
    %437 = vmatpush1.msra.mxu0 %v174
    %438 = vmatprep.subr.mxu0 0.0
    %439 = vmatpush1.msra.mxu0 %v175
    %440 = vmatprep.subr.mxu0 0.0
    %441 = vmatpush1.msra.mxu0 %v176
    %442 = vmatprep.subr.mxu0 0.0
    %443 = vmatpush1.msra.mxu0 %v177
    %444 = vmatprep.subr.mxu0 0.0
    %445 = vmatpush1.msra.mxu0 %v178
    %446 = vmatprep.subr.mxu0 0.0
    %447 = vmatpush1.msra.mxu0 %v179
    %448 = vmatprep.subr.mxu0 0.0
    %449 = vmatpush1.msra.mxu0 %v180
    %450 = vmatprep.subr.mxu0 0.0
    %451 = vmatpush1.msra.mxu0 %v181
    %452 = vmatprep.subr.mxu0 0.0
    %453 = vmatpush1.msra.mxu0 %v182
    %454 = vmatprep.subr.mxu0 0.0
    %455 = vmatpush1.msra.mxu0 %v183
    %456 = vmatprep.subr.mxu0 0.0
    %457 = vmatpush1.msra.mxu0 %v184
    %458 = vmatprep.subr.mxu0 0.0
    %459 = vmatpush1.msra.mxu0 %v185
    %460 = vmatprep.subr.mxu0 0.0
    %461 = vmatpush1.msra.mxu0 %v186
    %462 = vmatprep.subr.mxu0 0.0
    %463 = vmatpush1.msra.mxu0 %v187
    %464 = vmatprep.subr.mxu0 0.0
    %465 = vmatpush1.msra.mxu0 %v188
    %466 = vmatprep.subr.mxu0 0.0
    %467 = vmatpush1.msra.mxu0 %v189
    %468 = vmatprep.subr.mxu0 0.0
    %469 = vmatpush1.msra.mxu0 %v190
    %470 = vmatprep.subr.mxu0 0.0
    %471 = vmatpush1.msra.mxu0 %v191
    %472 = vmatprep.subr.mxu0 0.0
    %473 = vmatpush1.msra.mxu0 %v192
    %474 = vmatprep.mubr.f32.mxu0 %v64
    %475 = vmatmul.mubr.f32.gmra.mrb[0].mxu0 %v63
    %v476 = vpop.f32.mrb[0].mxu0
    %v477 = vadd.f32 %v407, %v476
    %v478 = vpop.f32.mrb[0].mxu0
    %479 = vdwg.mxu0
    %v480 = vand.u32 2147483647, %v477
    %v481 = vsub.f32 0.0, %v480
    %v482 = vmul.f32 %v481, 1.442695
    %v483 = vpow.pop %v482
    %v484 = vadd.f32 %v483, 1.0
    %v485 = vrcp.pop %v484
    %vm486 = vcmp.ge.f32.partialorder %v477, 0.0
    %v487 = vmul.f32 %v483, %v485
    %v488 = vsel %vm486, %v485, %v487
    %v489 = vld [vmem:[#allocation7] sm:$0xff]
    %v490 = vld [vmem:[#allocation7 + $0x8] sm:$0xff]
    %v491 = vld [vmem:[#allocation7 + $0x10] sm:$0xff]
    %v492 = vld [vmem:[#allocation7 + $0x18] sm:$0xff]
    %v493 = vld [vmem:[#allocation7 + $0x20] sm:$0xff]
    %v494 = vld [vmem:[#allocation7 + $0x28] sm:$0xff]
    %v495 = vld [vmem:[#allocation7 + $0x30] sm:$0xff]
    %v496 = vld [vmem:[#allocation7 + $0x38] sm:$0xff]
    %v497 = vld [vmem:[#allocation7 + $0x40] sm:$0xff]
    %v498 = vld [vmem:[#allocation7 + $0x48] sm:$0xff]
    %v499 = vld [vmem:[#allocation7 + $0x50] sm:$0xff]
    %v500 = vld [vmem:[#allocation7 + $0x58] sm:$0xff]
    %v501 = vld [vmem:[#allocation7 + $0x60] sm:$0xff]
    %v502 = vld [vmem:[#allocation7 + $0x68] sm:$0xff]
    %v503 = vld [vmem:[#allocation7 + $0x70] sm:$0xff]
    %v504 = vld [vmem:[#allocation7 + $0x78] sm:$0xff]
    %505 = vmatprep.subr.mxu0 0.0
    %506 = vmatpush1.msra.mxu0 %v489
    %507 = vmatprep.subr.mxu0 0.0
    %508 = vmatpush1.msra.mxu0 %v490
    %509 = vmatprep.subr.mxu0 0.0
    %510 = vmatpush1.msra.mxu0 %v491
    %511 = vmatprep.subr.mxu0 0.0
    %512 = vmatpush1.msra.mxu0 %v492
    %513 = vmatprep.subr.mxu0 0.0
    %514 = vmatpush1.msra.mxu0 %v493
    %515 = vmatprep.subr.mxu0 0.0
    %516 = vmatpush1.msra.mxu0 %v494
    %517 = vmatprep.subr.mxu0 0.0
    %518 = vmatpush1.msra.mxu0 %v495
    %519 = vmatprep.subr.mxu0 0.0
    %520 = vmatpush1.msra.mxu0 %v496
    %521 = vmatprep.subr.mxu0 0.0
    %522 = vmatpush1.msra.mxu0 %v497
    %523 = vmatprep.subr.mxu0 0.0
    %524 = vmatpush1.msra.mxu0 %v498
    %525 = vmatprep.subr.mxu0 0.0
    %526 = vmatpush1.msra.mxu0 %v499
    %527 = vmatprep.subr.mxu0 0.0
    %528 = vmatpush1.msra.mxu0 %v500
    %529 = vmatprep.subr.mxu0 0.0
    %530 = vmatpush1.msra.mxu0 %v501
    %531 = vmatprep.subr.mxu0 0.0
    %532 = vmatpush1.msra.mxu0 %v502
    %533 = vmatprep.subr.mxu0 0.0
    %534 = vmatpush1.msra.mxu0 %v503
    %535 = vmatprep.subr.mxu0 0.0
    %536 = vmatpush1.msra.mxu0 %v504
    %537 = vmatprep.subr.mxu0 0.0
    %538 = vmatpush1.msra.mxu0 0.0
    %539 = vmatprep.subr.mxu0 0.0
    %540 = vmatpush1.msra.mxu0 0.0
    %541 = vmatprep.subr.mxu0 0.0
    %542 = vmatpush1.msra.mxu0 0.0
    %543 = vmatprep.subr.mxu0 0.0
    %544 = vmatpush1.msra.mxu0 0.0
    %545 = vmatprep.subr.mxu0 0.0
    %546 = vmatpush1.msra.mxu0 0.0
    %547 = vmatprep.subr.mxu0 0.0
    %548 = vmatpush1.msra.mxu0 0.0
    %549 = vmatprep.subr.mxu0 0.0
    %550 = vmatpush1.msra.mxu0 0.0
    %551 = vmatprep.subr.mxu0 0.0
    %552 = vmatpush1.msra.mxu0 0.0
    %553 = vmatprep.subr.mxu0 0.0
    %554 = vmatpush1.msra.mxu0 0.0
    %555 = vmatprep.subr.mxu0 0.0
    %556 = vmatpush1.msra.mxu0 0.0
    %557 = vmatprep.subr.mxu0 0.0
    %558 = vmatpush1.msra.mxu0 0.0
    %559 = vmatprep.subr.mxu0 0.0
    %560 = vmatpush1.msra.mxu0 0.0
    %561 = vmatprep.subr.mxu0 0.0
    %562 = vmatpush1.msra.mxu0 0.0
    %563 = vmatprep.subr.mxu0 0.0
    %564 = vmatpush1.msra.mxu0 0.0
    %565 = vmatprep.subr.mxu0 0.0
    %566 = vmatpush1.msra.mxu0 0.0
    %567 = vmatprep.subr.mxu0 0.0
    %568 = vmatpush1.msra.mxu0 0.0
    %569 = vmatprep.mubr.f32.mxu0 0.0
    %570 = vmatmul.mubr.f32.gmra.mrb[0].mxu0 %v488
    %v571 = vpop.f32.mrb[0].mxu0
    %v572 = vadd.f32 0.0, %v571
    %v573 = vpop.f32.mrb[0].mxu0
    %574 = vdwg.mxu0
    %v575 = vmax.f32 %v572, 1e-30
    %v576 = vrcp.pop %v575
    %v577 = vmul.f32 %v488, %v576
    %578 = vst [vmem:[#allocation8] sm:$0xff] %v577
    // Predicated region
    $region30: #{tpu_custom_call.1} parent=1 // pred_check
      _
    $region31: #{tpu_custom_call.1} parent=1 // pred_check_branch
      %580 = sbr.rel (0) target = $region33
    $region32: #{tpu_custom_call.1} parent=1 // pred_region
      %s582 = ssub.s32 128, 128
      %583 = vsyncadd [#allocation4], %s582
      %s585 = sshll.u32 [#allocation8], 4
      %s586 = int_to_ptr.vmem [resolvable:$true] %s585
      %588 = dma.vmem_to_hbm [thread:$0]  %s586, 128, %s4, [#allocation4]
    $region33: #{tpu_custom_call.1} parent=1 // pred_fallthru
      _
    // Predicated region
    $region34: #{tpu_custom_call.1} parent=1 // pred_check
      _
    $region35: #{tpu_custom_call.1} parent=1 // pred_check_branch
      %590 = sbr.rel (0) target = $region37
    $region36: #{tpu_custom_call.1} parent=1 // pred_region
      %591 = dma.done [#allocation4], 128
    $region37: #{tpu_custom_call.1} parent=1 // pred_fallthru
      _
    %592 = vsyncpa [#allocation3], 1
    %593 = vsyncpa [#allocation6], 1
    %594 = vsyncpa [#allocation4], 1

</llo_original>
